<compile_context>
chip_gen: v6e
topology: v6e:2x2x1
jax: 0.10.0
libtpu: 0.0.40
codegen_flags: <defaults>
</compile_context>

<pallas_src>
import functools

import jax
import jax.numpy as jnp
from jax.experimental import pallas as pl
from jax.experimental.pallas import tpu as pltpu


_VMEM_TILE_BUDGET = 20 * 1024 * 1024   # budget for streamed tiles + in-kernel temps
_VMEM_LIMIT_BYTES = 48 * 1024 * 1024   # explicit scoped-VMEM limit (v5e default is 16 MiB)
_PAD_HW_THRESHOLD = 1024               # lane-pad only tiny spatial extents


# ----------------------------------------------------------------------------- kernels


def aff_fused_kernel(x_ref, r_ref, lw1t_ref, lb1_ref, lw2t_ref,
                     gw1t_ref, gb1_ref, gw2t_ref, b2c_ref, o_ref, *, inv_hw):
    """Single-pass AFF for one batch element.

    x_ref, r_ref, o_ref : (1, C, HWp)  channels on sublanes, pixels on lanes
    lw1t (CI, C), lb1 (CI, 1), lw2t (C, CI)   : folded local-branch weights
    gw1t (CI, C), gb1 (CI, 1), gw2t (C, CI)   : folded global-branch weights
    b2c  (C, 1)  : local b2 + global b2 (both broadcast over pixels)
    inv_hw       : 1 / (true H*W)  (padding lanes are zeros, so sum is exact)
    """
    x = x_ref[0]                      # (C, HWp)
    r = r_ref[0]                      # (C, HWp)
    xa = x + r

    # --- Global branch: AdaptiveAvgPool2d(1) + folded 1x1 -> ReLU -> 1x1 -----
    pooled = jnp.sum(xa, axis=1, keepdims=True) * inv_hw          # (C, 1)
    # Broadcast to 128 lanes so both tiny dots use standard lane-wide operands.
    pooled_b = jnp.broadcast_to(pooled, (pooled.shape[0], 128))   # (C, 128)
    g = jnp.dot(gw1t_ref[...], pooled_b,
                preferred_element_type=jnp.float32) + gb1_ref[...]
    g = jnp.maximum(g, 0.0)                                       # (CI, 128)
    xg = jnp.dot(gw2t_ref[...], g,
                 preferred_element_type=jnp.float32)[:, 0:1]      # (C, 1)

    # --- Local branch: folded 1x1 -> ReLU -> 1x1 per pixel -------------------
    h = jnp.dot(lw1t_ref[...], xa,
                preferred_element_type=jnp.float32) + lb1_ref[...]
    h = jnp.maximum(h, 0.0)                                       # (CI, HWp)
    xl = jnp.dot(lw2t_ref[...], h,
                 preferred_element_type=jnp.float32)              # (C, HWp)

    # Gate and fuse (both output biases folded into one (C,1) term).
    wei = jax.nn.sigmoid(xl + xg + b2c_ref[...])
    o_ref[0] = 2.0 * x * wei + 2.0 * r * (1.0 - wei)


def aff_tiled_kernel(x_ref, r_ref, xgb_ref, w1t_ref, b1_ref, w2t_ref, o_ref):
    """Two-pass fallback hot path for one (1, C, THW) pixel tile.

    xgb_ref : (1, C, 1) per-batch global attention (+ folded local b2),
              computed in XLA from the pooled (N, C) tensor.
    """
    x = x_ref[0]                      # (C, THW)
    r = r_ref[0]
    xa = x + r

    h = jnp.dot(w1t_ref[...], xa,
                preferred_element_type=jnp.float32) + b1_ref[...]
    h = jnp.maximum(h, 0.0)           # (CI, THW)
    xl = jnp.dot(w2t_ref[...], h,
                 preferred_element_type=jnp.float32)              # (C, THW)

    wei = jax.nn.sigmoid(xl + xgb_ref[0])        # (C,1) broadcasts over lanes
    o_ref[0] = 2.0 * x * wei + 2.0 * r * (1.0 - wei)


# ----------------------------------------------------------------------------- helpers


def fold_bn_into_matmul(w, b, gamma, beta, mean, var, eps=1e-5):
    """Fold eval-mode BatchNorm into a (Cin, Cout) matmul weight + bias."""
    scale = gamma / jnp.sqrt(var + eps)          # (Cout,)
    w_f = w * scale[None, :]
    b_f = (b - mean) * scale + beta
    return w_f, b_f


def make_aff_params(key, channels, r=4):
    """Deterministic synthetic parameters matching the PyTorch module shapes."""
    inter = channels // r
    ks = jax.random.split(key, 24)
    p = {}
    for branch, off in (("local", 0), ("global", 12)):
        w1 = 0.1 * jax.random.normal(ks[off + 0], (channels, inter), jnp.float32)
        b1 = 0.1 * jax.random.normal(ks[off + 1], (inter,), jnp.float32)
        g1 = 1.0 + 0.1 * jax.random.normal(ks[off + 2], (inter,), jnp.float32)
        be1 = 0.1 * jax.random.normal(ks[off + 3], (inter,), jnp.float32)
        m1 = 0.05 * jax.random.normal(ks[off + 4], (inter,), jnp.float32)
        v1 = 0.5 + jax.random.uniform(ks[off + 5], (inter,), jnp.float32)
        w2 = 0.1 * jax.random.normal(ks[off + 6], (inter, channels), jnp.float32)
        b2 = 0.1 * jax.random.normal(ks[off + 7], (channels,), jnp.float32)
        g2 = 1.0 + 0.1 * jax.random.normal(ks[off + 8], (channels,), jnp.float32)
        be2 = 0.1 * jax.random.normal(ks[off + 9], (channels,), jnp.float32)
        m2 = 0.05 * jax.random.normal(ks[off + 10], (channels,), jnp.float32)
        v2 = 0.5 + jax.random.uniform(ks[off + 11], (channels,), jnp.float32)
        w1f, b1f = fold_bn_into_matmul(w1, b1, g1, be1, m1, v1)
        w2f, b2f = fold_bn_into_matmul(w2, b2, g2, be2, m2, v2)
        p[branch] = dict(w1=w1f, b1=b1f, w2=w2f, b2=b2f)
    return p


def _pick_tile(hw, c, ci, max_tile, budget=_VMEM_TILE_BUDGET):
    """Lane-tile size under a VMEM budget.

    Per-lane f32 bytes ~ streamed x/r/out double-buffered (6*C) plus in-kernel
    temporaries xa/xl/wei (3*C) and the hidden activation (CI).
    Returns the full extent when it fits (enables the fused single-pass path).
    """
    per_lane = 4 * (9 * c + ci)
    cap = max(128, (budget // per_lane // 128) * 128)
    limit = min(max_tile, cap)
    if hw <= limit:
        return hw
    return max(128, (limit // 128) * 128)


# ----------------------------------------------------------------------------- wrapper


@functools.partial(jax.jit, static_argnames=("max_tile",))
def aff_forward(x_nchw, res_nchw, params, max_tile=32768):
    """AFF forward. Inputs/outputs are NCHW to match the PyTorch module."""
    N, C, H, W = x_nchw.shape
    HW = H * W
    p_l, p_g = params["local"], params["global"]
    CI = p_l["w1"].shape[1]

    # Native-layout views: channels on sublanes, pixels on lanes. No transposes.
    xf = x_nchw.reshape(N, C, HW)
    rf = res_nchw.reshape(N, C, HW)

    # Lane-dense padding for tiny spatial extents only (full-width vst instead
    # of masked partial stores); the pad copy is negligible at these sizes.
    HWp = HW
    if HW % 128 != 0 and HW < _PAD_HW_THRESHOLD:
        HWp = ((HW + 127) // 128) * 128
        xf = jnp.pad(xf, ((0, 0), (0, 0), (0, HWp - HW)))
        rf = jnp.pad(rf, ((0, 0), (0, 0), (0, HWp - HW)))

    # Folded weights in matmul form (contraction over the channel/sublane axis).
    lw1t = p_l["w1"].T                     # (CI, C)
    lb1 = p_l["b1"].reshape(CI, 1)         # (CI, 1)
    lw2t = p_l["w2"].T                     # (C, CI)

    thw = _pick_tile(HWp, C, CI, max_tile)
    compiler_params_1d = pltpu.CompilerParams(
        dimension_semantics=("parallel",),
        vmem_limit_bytes=_VMEM_LIMIT_BYTES,
    )
    compiler_params_2d = pltpu.CompilerParams(
        dimension_semantics=("parallel", "parallel"),
        vmem_limit_bytes=_VMEM_LIMIT_BYTES,
    )

    if thw == HWp:
        # ---- Fused single-pass path: pool + global MLP run in-kernel --------
        # HBM traffic: 2 reads + 1 write of the big tensors (ideal).
        # TODO(synk): with N == 1 this grid has a single step, leaving one v7x
        # TensorCore idle; splitting HW would break the in-kernel pool, and the
        # two-pass alternative costs ~1.6x traffic, so we accept it.
        gw1t = p_g["w1"].T                 # (CI, C)
        gb1 = p_g["b1"].reshape(CI, 1)     # (CI, 1)
        gw2t = p_g["w2"].T                 # (C, CI)
        b2c = (p_l["b2"] + p_g["b2"]).reshape(C, 1)   # both output biases

        out = pl.pallas_call(
            functools.partial(aff_fused_kernel, inv_hw=1.0 / HW),
            out_shape=jax.ShapeDtypeStruct((N, C, HWp), jnp.float32),
            grid_spec=pltpu.PrefetchScalarGridSpec(
                num_scalar_prefetch=0,
                grid=(N,),
                in_specs=[
                    pl.BlockSpec((1, C, HWp), lambda n: (n, 0, 0)),   # x
                    pl.BlockSpec((1, C, HWp), lambda n: (n, 0, 0)),   # residual
                    pl.BlockSpec((CI, C), lambda n: (0, 0)),          # local w1^T
                    pl.BlockSpec((CI, 1), lambda n: (0, 0)),          # local b1
                    pl.BlockSpec((C, CI), lambda n: (0, 0)),          # local w2^T
                    pl.BlockSpec((CI, C), lambda n: (0, 0)),          # global w1^T
                    pl.BlockSpec((CI, 1), lambda n: (0, 0)),          # global b1
                    pl.BlockSpec((C, CI), lambda n: (0, 0)),          # global w2^T
                    pl.BlockSpec((C, 1), lambda n: (0, 0)),           # b2 local+global
                ],
                out_specs=pl.BlockSpec((1, C, HWp), lambda n: (n, 0, 0)),
            ),
            compiler_params=compiler_params_1d,
        )(xf, rf, lw1t, lb1, lw2t, gw1t, gb1, gw2t, b2c)
    else:
        # ---- Two-pass fallback (per-batch slab exceeds the VMEM budget) -----
        # Global branch in XLA glue on the pooled (N, C) tensor (unpadded view,
        # so the mean divisor is the true H*W).
        pooled = jnp.mean(x_nchw + res_nchw, axis=(2, 3))            # (N, C)
        g = jnp.maximum(pooled @ p_g["w1"] + p_g["b1"], 0.0)
        xg = g @ p_g["w2"] + p_g["b2"]                               # (N, C)
        xgb = (xg + p_l["b2"][None, :]).reshape(N, C, 1)             # fold local b2

        grid = (N, pl.cdiv(HWp, thw))
        out = pl.pallas_call(
            aff_tiled_kernel,
            out_shape=jax.ShapeDtypeStruct((N, C, HWp), jnp.float32),
            grid_spec=pltpu.PrefetchScalarGridSpec(
                num_scalar_prefetch=0,
                grid=grid,
                in_specs=[
                    pl.BlockSpec((1, C, thw), lambda n, i: (n, 0, i)),   # x
                    pl.BlockSpec((1, C, thw), lambda n, i: (n, 0, i)),   # residual
                    pl.BlockSpec((1, C, 1), lambda n, i: (n, 0, 0)),     # xg + b2 (batch)
                    pl.BlockSpec((CI, C), lambda n, i: (0, 0)),          # w1^T
                    pl.BlockSpec((CI, 1), lambda n, i: (0, 0)),          # b1
                    pl.BlockSpec((C, CI), lambda n, i: (0, 0)),          # w2^T
                ],
                out_specs=pl.BlockSpec((1, C, thw), lambda n, i: (n, 0, i)),
            ),
            compiler_params=compiler_params_2d,
        )(xf, rf, xgb, lw1t, lb1, lw2t)

    if HWp != HW:
        out = out[:, :, :HW]
    return out.reshape(N, C, H, W)


# ----------------------------------------------------------------------------- reference


def aff_reference(x, r, params):
    """Pure-JAX reference (NCHW) for correctness checking."""
    xa = x + r
    p_l, p_g = params["local"], params["global"]
    h = jnp.maximum(
        jnp.einsum("nchw,ci->nihw", xa, p_l["w1"]) + p_l["b1"][None, :, None, None],
        0.0,
    )
    xl = jnp.einsum("nihw,ic->nchw", h, p_l["w2"]) + p_l["b2"][None, :, None, None]
    pooled = jnp.mean(xa, axis=(2, 3))
    g = jnp.maximum(pooled @ p_g["w1"] + p_g["b1"], 0.0)
    xg = g @ p_g["w2"] + p_g["b2"]
    wei = jax.nn.sigmoid(xl + xg[:, :, None, None])
    return 2.0 * x * wei + 2.0 * r * (1.0 - wei)


if __name__ == "__main__":
    key = jax.random.PRNGKey(0)
    k_x, k_r, k_p, k_x2, k_r2 = jax.random.split(key, 5)

    # Test 1: shipped small shape (channels=16, r=4 -> inter=4; HW=64 -> padded
    # to 128 lanes, fused single-pass path).
    N, C, H, W = 2, 16, 8, 8
    x = jax.random.normal(k_x, (N, C, H, W), jnp.float32)
    residual = jax.random.normal(k_r, (N, C, H, W), jnp.float32)
    params = make_aff_params(k_p, channels=C, r=4)

    out = jax.block_until_ready(aff_forward(x, residual, params))
    ref = aff_reference(x, residual, params)
    assert out.shape == (N, C, H, W)
    assert jnp.allclose(out, ref, atol=1e-5, rtol=1e-5), "fused(pad) mismatch"

    # Test 2: HW multiple of 128 (no padding). Exercise both the fused path
    # (default max_tile) and the tiled two-pass fallback (forced max_tile=128).
    H2 = W2 = 16
    x2 = jax.random.normal(k_x2, (N, C, H2, W2), jnp.float32)
    r2 = jax.random.normal(k_r2, (N, C, H2, W2), jnp.float32)
    ref2 = aff_reference(x2, r2, params)

    out2_fused = jax.block_until_ready(aff_forward(x2, r2, params))
    assert jnp.allclose(out2_fused, ref2, atol=1e-5, rtol=1e-5), "fused mismatch"

    out2_tiled = jax.block_until_ready(aff_forward(x2, r2, params, max_tile=128))
    assert jnp.allclose(out2_tiled, ref2, atol=1e-5, rtol=1e-5), "tiled mismatch"

    print("KERNEL_OK")
</pallas_src>

<mosaic_0001>
module attributes {stable_mosaic.version = 11 : i64} {
  func.func @aff_fused_kernel(%arg0: i32, %arg1: memref<1x16x128xf32, #tpu.memory_space<vmem>>, %arg2: memref<1x16x128xf32, #tpu.memory_space<vmem>>, %arg3: memref<4x16xf32, #tpu.memory_space<vmem>>, %arg4: memref<4x1xf32, #tpu.memory_space<vmem>>, %arg5: memref<16x4xf32, #tpu.memory_space<vmem>>, %arg6: memref<4x16xf32, #tpu.memory_space<vmem>>, %arg7: memref<4x1xf32, #tpu.memory_space<vmem>>, %arg8: memref<16x4xf32, #tpu.memory_space<vmem>>, %arg9: memref<16x1xf32, #tpu.memory_space<vmem>>, %arg10: memref<1x16x128xf32, #tpu.memory_space<vmem>>) attributes {dimension_semantics = [#tpu.dimension_semantics<parallel>], iteration_bounds = array<i64: 2>, scalar_prefetch = 0 : i64, scratch_operands = 0 : i64, tpu.core_type = #tpu.core_type<tc>, window_params = [{transform_indices = @transform_0, window_bounds = array<i64: 1, 16, 128>}, {transform_indices = @transform_1, window_bounds = array<i64: 1, 16, 128>}, {pipeline_mode = #tpu.pipeline_mode<synchronous>, transform_indices = @transform_2, window_bounds = array<i64: 4, 16>}, {pipeline_mode = #tpu.pipeline_mode<synchronous>, transform_indices = @transform_3, window_bounds = array<i64: 4, 1>}, {pipeline_mode = #tpu.pipeline_mode<synchronous>, transform_indices = @transform_4, window_bounds = array<i64: 16, 4>}, {pipeline_mode = #tpu.pipeline_mode<synchronous>, transform_indices = @transform_5, window_bounds = array<i64: 4, 16>}, {pipeline_mode = #tpu.pipeline_mode<synchronous>, transform_indices = @transform_6, window_bounds = array<i64: 4, 1>}, {pipeline_mode = #tpu.pipeline_mode<synchronous>, transform_indices = @transform_7, window_bounds = array<i64: 16, 4>}, {pipeline_mode = #tpu.pipeline_mode<synchronous>, transform_indices = @transform_8, window_bounds = array<i64: 16, 1>}, {transform_indices = @transform_9, window_bounds = array<i64: 1, 16, 128>}]} {
    %c0 = arith.constant 0 : index
    %c0_0 = arith.constant 0 : index
    %c0_1 = arith.constant 0 : index
    %0 = vector.load %arg1[%c0, %c0_0, %c0_1] : memref<1x16x128xf32, #tpu.memory_space<vmem>>, vector<1x16x128xf32>
    %1 = vector.shape_cast %0 : vector<1x16x128xf32> to vector<16x128xf32>
    %c0_2 = arith.constant 0 : index
    %c0_3 = arith.constant 0 : index
    %c0_4 = arith.constant 0 : index
    %2 = vector.load %arg2[%c0_2, %c0_3, %c0_4] : memref<1x16x128xf32, #tpu.memory_space<vmem>>, vector<1x16x128xf32>
    %3 = vector.shape_cast %2 : vector<1x16x128xf32> to vector<16x128xf32>
    %4 = arith.addf %1, %3 : vector<16x128xf32>
    %cst = arith.constant dense<0.000000e+00> : vector<16xf32>
    %5 = vector.multi_reduction <add>, %4, %cst [1] : vector<16x128xf32> to vector<16xf32>
    %6 = vector.shape_cast %5 : vector<16xf32> to vector<16x1xf32>
    %cst_5 = arith.constant 1.562500e-02 : f32
    %7 = vector.broadcast %cst_5 : f32 to vector<16x1xf32>
    %8 = arith.mulf %6, %7 : vector<16x1xf32>
    %9 = vector.shape_cast %8 : vector<16x1xf32> to vector<16x1xf32>
    %10 = vector.broadcast %9 : vector<16x1xf32> to vector<16x128xf32>
    %c0_6 = arith.constant 0 : index
    %c0_7 = arith.constant 0 : index
    %11 = vector.load %arg6[%c0_6, %c0_7] : memref<4x16xf32, #tpu.memory_space<vmem>>, vector<4x16xf32>
    %cst_8 = arith.constant dense<0.000000e+00> : vector<4x128xf32>
    %12 = tpu.matmul %11, %10, %cst_8 {dimension_numbers = #tpu.dot_dimension_numbers<[1], [0], [0], [1], [0, 0, 1, 1], [], []>} : vector<4x16xf32>, vector<16x128xf32>, vector<4x128xf32> -> vector<4x128xf32>
    %c0_9 = arith.constant 0 : index
    %c0_10 = arith.constant 0 : index
    %13 = vector.load %arg7[%c0_9, %c0_10] : memref<4x1xf32, #tpu.memory_space<vmem>>, vector<4x1xf32>
    %14 = vector.broadcast %13 : vector<4x1xf32> to vector<4x128xf32>
    %15 = arith.addf %12, %14 : vector<4x128xf32>
    %cst_11 = arith.constant 0.000000e+00 : f32
    %16 = vector.broadcast %cst_11 : f32 to vector<4x128xf32>
    %17 = arith.maximumf %15, %16 : vector<4x128xf32>
    %c0_12 = arith.constant 0 : index
    %c0_13 = arith.constant 0 : index
    %18 = vector.load %arg8[%c0_12, %c0_13] : memref<16x4xf32, #tpu.memory_space<vmem>>, vector<16x4xf32>
    %cst_14 = arith.constant dense<0.000000e+00> : vector<16x128xf32>
    %19 = tpu.matmul %18, %17, %cst_14 {dimension_numbers = #tpu.dot_dimension_numbers<[1], [0], [0], [1], [0, 0, 1, 1], [], []>} : vector<16x4xf32>, vector<4x128xf32>, vector<16x128xf32> -> vector<16x128xf32>
    %20 = vector.extract_strided_slice %19 {offsets = [0, 0], sizes = [16, 1], strides = [1, 1]} : vector<16x128xf32> to vector<16x1xf32>
    %c0_15 = arith.constant 0 : index
    %c0_16 = arith.constant 0 : index
    %21 = vector.load %arg3[%c0_15, %c0_16] : memref<4x16xf32, #tpu.memory_space<vmem>>, vector<4x16xf32>
    %cst_17 = arith.constant dense<0.000000e+00> : vector<4x128xf32>
    %22 = tpu.matmul %21, %4, %cst_17 {dimension_numbers = #tpu.dot_dimension_numbers<[1], [0], [0], [1], [0, 0, 1, 1], [], []>} : vector<4x16xf32>, vector<16x128xf32>, vector<4x128xf32> -> vector<4x128xf32>
    %c0_18 = arith.constant 0 : index
    %c0_19 = arith.constant 0 : index
    %23 = vector.load %arg4[%c0_18, %c0_19] : memref<4x1xf32, #tpu.memory_space<vmem>>, vector<4x1xf32>
    %24 = vector.broadcast %23 : vector<4x1xf32> to vector<4x128xf32>
    %25 = arith.addf %22, %24 : vector<4x128xf32>
    %cst_20 = arith.constant 0.000000e+00 : f32
    %26 = vector.broadcast %cst_20 : f32 to vector<4x128xf32>
    %27 = arith.maximumf %25, %26 : vector<4x128xf32>
    %c0_21 = arith.constant 0 : index
    %c0_22 = arith.constant 0 : index
    %28 = vector.load %arg5[%c0_21, %c0_22] : memref<16x4xf32, #tpu.memory_space<vmem>>, vector<16x4xf32>
    %cst_23 = arith.constant dense<0.000000e+00> : vector<16x128xf32>
    %29 = tpu.matmul %28, %27, %cst_23 {dimension_numbers = #tpu.dot_dimension_numbers<[1], [0], [0], [1], [0, 0, 1, 1], [], []>} : vector<16x4xf32>, vector<4x128xf32>, vector<16x128xf32> -> vector<16x128xf32>
    %30 = vector.broadcast %20 : vector<16x1xf32> to vector<16x128xf32>
    %31 = arith.addf %29, %30 : vector<16x128xf32>
    %c0_24 = arith.constant 0 : index
    %c0_25 = arith.constant 0 : index
    %32 = vector.load %arg9[%c0_24, %c0_25] : memref<16x1xf32, #tpu.memory_space<vmem>>, vector<16x1xf32>
    %33 = vector.broadcast %32 : vector<16x1xf32> to vector<16x128xf32>
    %34 = arith.addf %31, %33 : vector<16x128xf32>
    %35 = arith.negf %34 : vector<16x128xf32>
    %36 = math.exp %35 : vector<16x128xf32>
    %cst_26 = arith.constant 1.000000e+00 : f32
    %37 = vector.broadcast %cst_26 : f32 to vector<16x128xf32>
    %38 = arith.addf %37, %36 : vector<16x128xf32>
    %39 = arith.divf %37, %38 : vector<16x128xf32>
    %cst_27 = arith.constant 2.000000e+00 : f32
    %40 = vector.broadcast %cst_27 : f32 to vector<16x128xf32>
    %41 = arith.mulf %40, %1 : vector<16x128xf32>
    %42 = arith.mulf %41, %39 : vector<16x128xf32>
    %cst_28 = arith.constant 2.000000e+00 : f32
    %43 = vector.broadcast %cst_28 : f32 to vector<16x128xf32>
    %44 = arith.mulf %43, %3 : vector<16x128xf32>
    %cst_29 = arith.constant 1.000000e+00 : f32
    %45 = vector.broadcast %cst_29 : f32 to vector<16x128xf32>
    %46 = arith.subf %45, %39 : vector<16x128xf32>
    %47 = arith.mulf %44, %46 : vector<16x128xf32>
    %48 = arith.addf %42, %47 : vector<16x128xf32>
    %c0_30 = arith.constant 0 : index
    %c0_31 = arith.constant 0 : index
    %c0_32 = arith.constant 0 : index
    %49 = vector.load %arg10[%c0_30, %c0_31, %c0_32] : memref<1x16x128xf32, #tpu.memory_space<vmem>>, vector<1x16x128xf32>
    %50 = vector.shape_cast %49 : vector<1x16x128xf32> to vector<16x128xf32>
    %51 = vector.shape_cast %48 : vector<16x128xf32> to vector<1x16x128xf32>
    tpu.vector_store %arg10[%c0_30, %c0_31, %c0_32], %51 {strides = array<i32>} : memref<1x16x128xf32, #tpu.memory_space<vmem>>, vector<1x16x128xf32>,
    return
  }
  func.func @transform_0(%arg0: i32) -> (i32, i32, i32) {
    %c0_i32 = arith.constant 0 : i32
    %c0_i32_0 = arith.constant 0 : i32
    %c0_i32_1 = arith.constant 0 : i32
    return %arg0, %c0_i32, %c0_i32_0 : i32, i32, i32
  }
  func.func @transform_1(%arg0: i32) -> (i32, i32, i32) {
    %c0_i32 = arith.constant 0 : i32
    %c0_i32_0 = arith.constant 0 : i32
    %c0_i32_1 = arith.constant 0 : i32
    return %arg0, %c0_i32, %c0_i32_0 : i32, i32, i32
  }
  func.func @transform_2(%arg0: i32) -> (i32, i32) {
    %c0_i32 = arith.constant 0 : i32
    %c0_i32_0 = arith.constant 0 : i32
    %c0_i32_1 = arith.constant 0 : i32
    return %c0_i32, %c0_i32_0 : i32, i32
  }
  func.func @transform_3(%arg0: i32) -> (i32, i32) {
    %c0_i32 = arith.constant 0 : i32
    %c0_i32_0 = arith.constant 0 : i32
    %c0_i32_1 = arith.constant 0 : i32
    return %c0_i32, %c0_i32_0 : i32, i32
  }
  func.func @transform_4(%arg0: i32) -> (i32, i32) {
    %c0_i32 = arith.constant 0 : i32
    %c0_i32_0 = arith.constant 0 : i32
    %c0_i32_1 = arith.constant 0 : i32
    return %c0_i32, %c0_i32_0 : i32, i32
  }
  func.func @transform_5(%arg0: i32) -> (i32, i32) {
    %c0_i32 = arith.constant 0 : i32
    %c0_i32_0 = arith.constant 0 : i32
    %c0_i32_1 = arith.constant 0 : i32
    return %c0_i32, %c0_i32_0 : i32, i32
  }
  func.func @transform_6(%arg0: i32) -> (i32, i32) {
    %c0_i32 = arith.constant 0 : i32
    %c0_i32_0 = arith.constant 0 : i32
    %c0_i32_1 = arith.constant 0 : i32
    return %c0_i32, %c0_i32_0 : i32, i32
  }
  func.func @transform_7(%arg0: i32) -> (i32, i32) {
    %c0_i32 = arith.constant 0 : i32
    %c0_i32_0 = arith.constant 0 : i32
    %c0_i32_1 = arith.constant 0 : i32
    return %c0_i32, %c0_i32_0 : i32, i32
  }
  func.func @transform_8(%arg0: i32) -> (i32, i32) {
    %c0_i32 = arith.constant 0 : i32
    %c0_i32_0 = arith.constant 0 : i32
    %c0_i32_1 = arith.constant 0 : i32
    return %c0_i32, %c0_i32_0 : i32, i32
  }
  func.func @transform_9(%arg0: i32) -> (i32, i32, i32) {
    %c0_i32 = arith.constant 0 : i32
    %c0_i32_0 = arith.constant 0 : i32
    %c0_i32_1 = arith.constant 0 : i32
    return %arg0, %c0_i32, %c0_i32_0 : i32, i32, i32
  }
}

</mosaic_0001>

<llo_original>
// kernel: aff_forward.1
$region0: #{aff_forward.1}
  #allocation0 [shape = 'u32[]', space=smem, size = 0x4, offset = 0x4, fixed_abs, tag = 'smem constant byte address 0x4 - core index']
  #allocation1 [shape = 'u32[144,128]{1,0:T(1,128)}', space=vmem, size = 0x12000, scoped, tag = 'internal scratch']
  %s0 = inlined_call_operand.vmem [shape: f32[2,16,128], index: 0, kind: input, shape index: {}]
  %s1 = inlined_call_operand.vmem [shape: f32[2,16,128], index: 1, kind: input, shape index: {}]
  %s2 = inlined_call_operand.vmem [shape: f32[4,16], index: 2, kind: input, shape index: {}]
  %s3 = inlined_call_operand.vmem [shape: f32[4,1], index: 3, kind: input, shape index: {}]
  %s4 = inlined_call_operand.vmem [shape: f32[16,4], index: 4, kind: input, shape index: {}]
  %s5 = inlined_call_operand.vmem [shape: f32[4,16], index: 5, kind: input, shape index: {}]
  %s6 = inlined_call_operand.vmem [shape: f32[4,1], index: 6, kind: input, shape index: {}]
  %s7 = inlined_call_operand.vmem [shape: f32[16,4], index: 7, kind: input, shape index: {}]
  %s8 = inlined_call_operand.vmem [shape: f32[16,1], index: 8, kind: input, shape index: {}]
  %s9 = inlined_call_operand.vmem [shape: f32[2,16,128], index: 9, kind: output, shape index: {}]
  %s10 = sld [smem:[#allocation0]]
  $region69: #{aff_forward.1} parent=0
    _
  %s12 = ssub.s32 1, %s10
  %s13 = scalar_select 0, %s12, %s10
  loop: start=0, step=1, limit=4
  $region2: #{aff_forward.1} parent=0 // loop_pre_header
    _
  $region3: #{aff_forward.1} parent=0 // loop_header
    %s15 = sphi 0, %s19
    %p16 = scmp.ge.s32.totalorder %s15, 4
    %s25 = sphi 0, %s27
    %s28 = sphi 0, %s25
    %s29 = sphi 0, %s28
    %s45 = sphi 0, %s29
    %s51 = sphi 0, %s53
    %s54 = sphi 0, %s51
    %s55 = sphi 0, %s54
    %s71 = sphi 0, %s55
    %s75 = sphi 0, %s75
    %s77 = sphi 0, %s75
    %s78 = sphi 0, %s77
    %s92 = sphi 0, %s78
    %s96 = sphi 0, %s96
    %s98 = sphi 0, %s96
    %s99 = sphi 0, %s98
    %s113 = sphi 0, %s99
    %s117 = sphi 0, %s117
    %s119 = sphi 0, %s117
    %s120 = sphi 0, %s119
    %s134 = sphi 0, %s120
    %s138 = sphi 0, %s138
    %s140 = sphi 0, %s138
    %s141 = sphi 0, %s140
    %s155 = sphi 0, %s141
    %s159 = sphi 0, %s159
    %s161 = sphi 0, %s159
    %s162 = sphi 0, %s161
    %s176 = sphi 0, %s162
    %s180 = sphi 0, %s180
    %s182 = sphi 0, %s180
    %s183 = sphi 0, %s182
    %s197 = sphi 0, %s183
    %s201 = sphi 0, %s201
    %s203 = sphi 0, %s201
    %s204 = sphi 0, %s203
    %s218 = sphi 0, %s204
    %s224 = sphi 0, %s226
    %s227 = sphi 0, %s224
    %s228 = sphi 0, %s227
    %s244 = sphi 0, %s228
  $region4: #{aff_forward.1} parent=0 // loop_header_branch
    %18 = sbr.rel (%p16) target = $region8
  $region5: #{aff_forward.1} parent=0 // loop_body
    %s20 = ssub.s32 %s15, 1
    %s21 = ssub.s32 %s15, 2
    %s22 = sadd.s32 %s15, 1
    %s23 = ssub.s32 %s15, %s22
    %p24 = scmp.eq.s32.totalorder %s23, 0
    %s26 = sadd.s32 %s25, 1
    %s27 = scalar_select %p24, %s25, %s26
    %p30 = pneg %p24
    %p31 = scmp.eq.s32.totalorder %s15, 1
    %p32 = por %p30, %p31
    %p33 = scmp.ne.s32.totalorder %s25, %s28
    %p34 = scmp.eq.s32.totalorder %s15, 0
    %p35 = por %p33, %p34
    %p36 = scmp.ne.s32.totalorder %s25, %s28
    %p37 = scmp.eq.s32.totalorder %s20, 1
    %p38 = por %p36, %p37
    %p39 = scmp.ne.s32.totalorder %s28, %s29
    %p40 = scmp.eq.s32.totalorder %s20, 0
    %p41 = por %p39, %p40
    %p42 = scmp.ne.s32.totalorder %s28, %s29
    %p43 = scmp.eq.s32.totalorder %s21, 1
    %p44 = por %p42, %p43
    %p46 = scmp.ne.s32.totalorder %s29, %s45
    %p47 = scmp.eq.s32.totalorder %s21, 0
    %p48 = por %p46, %p47
    %s49 = ssub.s32 %s15, %s22
    %p50 = scmp.eq.s32.totalorder %s49, 0
    %s52 = sadd.s32 %s51, 1
    %s53 = scalar_select %p50, %s51, %s52
    %p56 = pneg %p50
    %p57 = scmp.eq.s32.totalorder %s15, 1
    %p58 = por %p56, %p57
    %p59 = scmp.ne.s32.totalorder %s51, %s54
    %p60 = scmp.eq.s32.totalorder %s15, 0
    %p61 = por %p59, %p60
    %p62 = scmp.ne.s32.totalorder %s51, %s54
    %p63 = scmp.eq.s32.totalorder %s20, 1
    %p64 = por %p62, %p63
    %p65 = scmp.ne.s32.totalorder %s54, %s55
    %p66 = scmp.eq.s32.totalorder %s20, 0
    %p67 = por %p65, %p66
    %p68 = scmp.ne.s32.totalorder %s54, %s55
    %p69 = scmp.eq.s32.totalorder %s21, 1
    %p70 = por %p68, %p69
    %p72 = scmp.ne.s32.totalorder %s55, %s71
    %p73 = scmp.eq.s32.totalorder %s21, 0
    %p74 = por %p72, %p73
    %s76 = sadd.s32 %s75, 1
    %p79 = scmp.eq.s32.totalorder %s15, 1
    %p80 = scmp.ne.s32.totalorder %s75, %s77
    %p81 = scmp.eq.s32.totalorder %s15, 0
    %p82 = por %p80, %p81
    %p83 = scmp.ne.s32.totalorder %s75, %s77
    %p84 = scmp.eq.s32.totalorder %s20, 1
    %p85 = por %p83, %p84
    %p86 = scmp.ne.s32.totalorder %s77, %s78
    %p87 = scmp.eq.s32.totalorder %s20, 0
    %p88 = por %p86, %p87
    %p89 = scmp.ne.s32.totalorder %s77, %s78
    %p90 = scmp.eq.s32.totalorder %s21, 1
    %p91 = por %p89, %p90
    %p93 = scmp.ne.s32.totalorder %s78, %s92
    %p94 = scmp.eq.s32.totalorder %s21, 0
    %p95 = por %p93, %p94
    %s97 = sadd.s32 %s96, 1
    %p100 = scmp.eq.s32.totalorder %s15, 1
    %p101 = scmp.ne.s32.totalorder %s96, %s98
    %p102 = scmp.eq.s32.totalorder %s15, 0
    %p103 = por %p101, %p102
    %p104 = scmp.ne.s32.totalorder %s96, %s98
    %p105 = scmp.eq.s32.totalorder %s20, 1
    %p106 = por %p104, %p105
    %p107 = scmp.ne.s32.totalorder %s98, %s99
    %p108 = scmp.eq.s32.totalorder %s20, 0
    %p109 = por %p107, %p108
    %p110 = scmp.ne.s32.totalorder %s98, %s99
    %p111 = scmp.eq.s32.totalorder %s21, 1
    %p112 = por %p110, %p111
    %p114 = scmp.ne.s32.totalorder %s99, %s113
    %p115 = scmp.eq.s32.totalorder %s21, 0
    %p116 = por %p114, %p115
    %s118 = sadd.s32 %s117, 1
    %p121 = scmp.eq.s32.totalorder %s15, 1
    %p122 = scmp.ne.s32.totalorder %s117, %s119
    %p123 = scmp.eq.s32.totalorder %s15, 0
    %p124 = por %p122, %p123
    %p125 = scmp.ne.s32.totalorder %s117, %s119
    %p126 = scmp.eq.s32.totalorder %s20, 1
    %p127 = por %p125, %p126
    %p128 = scmp.ne.s32.totalorder %s119, %s120
    %p129 = scmp.eq.s32.totalorder %s20, 0
    %p130 = por %p128, %p129
    %p131 = scmp.ne.s32.totalorder %s119, %s120
    %p132 = scmp.eq.s32.totalorder %s21, 1
    %p133 = por %p131, %p132
    %p135 = scmp.ne.s32.totalorder %s120, %s134
    %p136 = scmp.eq.s32.totalorder %s21, 0
    %p137 = por %p135, %p136
    %s139 = sadd.s32 %s138, 1
    %p142 = scmp.eq.s32.totalorder %s15, 1
    %p143 = scmp.ne.s32.totalorder %s138, %s140
    %p144 = scmp.eq.s32.totalorder %s15, 0
    %p145 = por %p143, %p144
    %p146 = scmp.ne.s32.totalorder %s138, %s140
    %p147 = scmp.eq.s32.totalorder %s20, 1
    %p148 = por %p146, %p147
    %p149 = scmp.ne.s32.totalorder %s140, %s141
    %p150 = scmp.eq.s32.totalorder %s20, 0
    %p151 = por %p149, %p150
    %p152 = scmp.ne.s32.totalorder %s140, %s141
    %p153 = scmp.eq.s32.totalorder %s21, 1
    %p154 = por %p152, %p153
    %p156 = scmp.ne.s32.totalorder %s141, %s155
    %p157 = scmp.eq.s32.totalorder %s21, 0
    %p158 = por %p156, %p157
    %s160 = sadd.s32 %s159, 1
    %p163 = scmp.eq.s32.totalorder %s15, 1
    %p164 = scmp.ne.s32.totalorder %s159, %s161
    %p165 = scmp.eq.s32.totalorder %s15, 0
    %p166 = por %p164, %p165
    %p167 = scmp.ne.s32.totalorder %s159, %s161
    %p168 = scmp.eq.s32.totalorder %s20, 1
    %p169 = por %p167, %p168
    %p170 = scmp.ne.s32.totalorder %s161, %s162
    %p171 = scmp.eq.s32.totalorder %s20, 0
    %p172 = por %p170, %p171
    %p173 = scmp.ne.s32.totalorder %s161, %s162
    %p174 = scmp.eq.s32.totalorder %s21, 1
    %p175 = por %p173, %p174
    %p177 = scmp.ne.s32.totalorder %s162, %s176
    %p178 = scmp.eq.s32.totalorder %s21, 0
    %p179 = por %p177, %p178
    %s181 = sadd.s32 %s180, 1
    %p184 = scmp.eq.s32.totalorder %s15, 1
    %p185 = scmp.ne.s32.totalorder %s180, %s182
    %p186 = scmp.eq.s32.totalorder %s15, 0
    %p187 = por %p185, %p186
    %p188 = scmp.ne.s32.totalorder %s180, %s182
    %p189 = scmp.eq.s32.totalorder %s20, 1
    %p190 = por %p188, %p189
    %p191 = scmp.ne.s32.totalorder %s182, %s183
    %p192 = scmp.eq.s32.totalorder %s20, 0
    %p193 = por %p191, %p192
    %p194 = scmp.ne.s32.totalorder %s182, %s183
    %p195 = scmp.eq.s32.totalorder %s21, 1
    %p196 = por %p194, %p195
    %p198 = scmp.ne.s32.totalorder %s183, %s197
    %p199 = scmp.eq.s32.totalorder %s21, 0
    %p200 = por %p198, %p199
    %s202 = sadd.s32 %s201, 1
    %p205 = scmp.eq.s32.totalorder %s15, 1
    %p206 = scmp.ne.s32.totalorder %s201, %s203
    %p207 = scmp.eq.s32.totalorder %s15, 0
    %p208 = por %p206, %p207
    %p209 = scmp.ne.s32.totalorder %s201, %s203
    %p210 = scmp.eq.s32.totalorder %s20, 1
    %p211 = por %p209, %p210
    %p212 = scmp.ne.s32.totalorder %s203, %s204
    %p213 = scmp.eq.s32.totalorder %s20, 0
    %p214 = por %p212, %p213
    %p215 = scmp.ne.s32.totalorder %s203, %s204
    %p216 = scmp.eq.s32.totalorder %s21, 1
    %p217 = por %p215, %p216
    %p219 = scmp.ne.s32.totalorder %s204, %s218
    %p220 = scmp.eq.s32.totalorder %s21, 0
    %p221 = por %p219, %p220
    %s222 = ssub.s32 %s15, %s22
    %p223 = scmp.eq.s32.totalorder %s222, 0
    %s225 = sadd.s32 %s224, 1
    %s226 = scalar_select %p223, %s224, %s225
    %p229 = pneg %p223
    %p230 = scmp.eq.s32.totalorder %s15, 1
    %p231 = por %p229, %p230
    %p232 = scmp.ne.s32.totalorder %s224, %s227
    %p233 = scmp.eq.s32.totalorder %s15, 0
    %p234 = por %p232, %p233
    %p235 = scmp.ne.s32.totalorder %s224, %s227
    %p236 = scmp.eq.s32.totalorder %s20, 1
    %p237 = por %p235, %p236
    %p238 = scmp.ne.s32.totalorder %s227, %s228
    %p239 = scmp.eq.s32.totalorder %s20, 0
    %p240 = por %p238, %p239
    %p241 = scmp.ne.s32.totalorder %s227, %s228
    %p242 = scmp.eq.s32.totalorder %s21, 1
    %p243 = por %p241, %p242
    %p245 = scmp.ne.s32.totalorder %s228, %s244
    %p246 = scmp.eq.s32.totalorder %s21, 0
    %p247 = por %p245, %p246
    %p248 = scmp.le.s32.totalorder 1, %s15
    %p249 = scmp.lt.s32.totalorder %s15, 3
    %p250 = pnand %p248, %p249
    %p251 = pneg %p250
    // Predicated region
    $region9: #{aff_forward.1} parent=5 // pred_check
      _
    $region10: #{aff_forward.1} parent=5 // pred_check_branch
      %253 = sbr.rel (%p250) target = $region12
    $region11: #{aff_forward.1} parent=5 // pred_region
      %s254 = ssub.s32 %s15, 1
      // Predicated region
      $region13: #{aff_forward.1} parent=11 // pred_check
        %p255 = pneg %p88
      $region14: #{aff_forward.1} parent=11 // pred_check_branch
        %257 = sbr.rel (%p255) target = $region16
      $region15: #{aff_forward.1} parent=11 // pred_region
        _
      $region16: #{aff_forward.1} parent=11 // pred_fallthru
        _
      // Predicated region
      $region17: #{aff_forward.1} parent=11 // pred_check
        %p258 = pneg %p109
      $region18: #{aff_forward.1} parent=11 // pred_check_branch
        %260 = sbr.rel (%p258) target = $region20
      $region19: #{aff_forward.1} parent=11 // pred_region
        _
      $region20: #{aff_forward.1} parent=11 // pred_fallthru
        _
      // Predicated region
      $region21: #{aff_forward.1} parent=11 // pred_check
        %p261 = pneg %p130
      $region22: #{aff_forward.1} parent=11 // pred_check_branch
        %263 = sbr.rel (%p261) target = $region24
      $region23: #{aff_forward.1} parent=11 // pred_region
        _
      $region24: #{aff_forward.1} parent=11 // pred_fallthru
        _
      // Predicated region
      $region25: #{aff_forward.1} parent=11 // pred_check
        %p264 = pneg %p151
      $region26: #{aff_forward.1} parent=11 // pred_check_branch
        %266 = sbr.rel (%p264) target = $region28
      $region27: #{aff_forward.1} parent=11 // pred_region
        _
      $region28: #{aff_forward.1} parent=11 // pred_fallthru
        _
      // Predicated region
      $region29: #{aff_forward.1} parent=11 // pred_check
        %p267 = pneg %p172
      $region30: #{aff_forward.1} parent=11 // pred_check_branch
        %269 = sbr.rel (%p267) target = $region32
      $region31: #{aff_forward.1} parent=11 // pred_region
        _
      $region32: #{aff_forward.1} parent=11 // pred_fallthru
        _
      // Predicated region
      $region33: #{aff_forward.1} parent=11 // pred_check
        %p270 = pneg %p193
      $region34: #{aff_forward.1} parent=11 // pred_check_branch
        %272 = sbr.rel (%p270) target = $region36
      $region35: #{aff_forward.1} parent=11 // pred_region
        _
      $region36: #{aff_forward.1} parent=11 // pred_fallthru
        _
      // Predicated region
      $region37: #{aff_forward.1} parent=11 // pred_check
        %p273 = pneg %p214
      $region38: #{aff_forward.1} parent=11 // pred_check_branch
        %275 = sbr.rel (%p273) target = $region40
      $region39: #{aff_forward.1} parent=11 // pred_region
        _
      $region40: #{aff_forward.1} parent=11 // pred_fallthru
        _
    $region12: #{aff_forward.1} parent=5 // pred_fallthru
      _
    %p276 = scmp.lt.s32.totalorder %s15, 2
    // Predicated region
    $region41: #{aff_forward.1} parent=5 // pred_check
      %p277 = pneg %p276
    $region42: #{aff_forward.1} parent=5 // pred_check_branch
      %279 = sbr.rel (%p277) target = $region44
    $region43: #{aff_forward.1} parent=5 // pred_region
      // Predicated region
      $region45: #{aff_forward.1} parent=43 // pred_check
        %p280 = pneg %p35
      $region46: #{aff_forward.1} parent=43 // pred_check_branch
        %282 = sbr.rel (%p280) target = $region48
      $region47: #{aff_forward.1} parent=43 // pred_region
        %p283 = scmp.lt.s32.totalorder %s15, 1
        %s284 = scalar_select %p283, %s15, 1
        %s285 = smul.addr %s284, 2
        %s286 = smul.addr %s285, 8
        %s287 = scalar_lea.vmem %s0, %s286
      $region48: #{aff_forward.1} parent=43 // pred_fallthru
        _
      // Predicated region
      $region49: #{aff_forward.1} parent=43 // pred_check
        %p288 = pneg %p61
      $region50: #{aff_forward.1} parent=43 // pred_check_branch
        %290 = sbr.rel (%p288) target = $region52
      $region51: #{aff_forward.1} parent=43 // pred_region
        %p291 = scmp.lt.s32.totalorder %s15, 1
        %s292 = scalar_select %p291, %s15, 1
        %s293 = smul.addr %s292, 2
        %s294 = smul.addr %s293, 8
        %s295 = scalar_lea.vmem %s1, %s294
      $region52: #{aff_forward.1} parent=43 // pred_fallthru
        _
    $region44: #{aff_forward.1} parent=5 // pred_fallthru
      _
    %p296 = scmp.le.s32.totalorder 1, %s15
    %p297 = scmp.lt.s32.totalorder %s15, 3
    %p298 = pnand %p296, %p297
    %p299 = pneg %p298
    // Predicated region
    $region53: #{aff_forward.1} parent=5 // pred_check
      _
    $region54: #{aff_forward.1} parent=5 // pred_check_branch
      %301 = sbr.rel (%p298) target = $region56
    $region55: #{aff_forward.1} parent=5 // pred_region
      %s302 = ssub.s32 %s15, 1
      %p303 = scmp.lt.s32.totalorder %s20, 1
      %s304 = scalar_select %p303, %s20, 1
      %s305 = smul.addr %s304, 2
      %s306 = smul.addr %s305, 8
      %s307 = scalar_lea.vmem %s0, %s306
      %p308 = pneg %p41
      %p309 = pneg %p38
      %p310 = scmp.lt.s32.totalorder %s20, 1
      %s311 = scalar_select %p310, %s20, 1
      %s312 = smul.addr %s311, 2
      %s313 = smul.addr %s312, 8
      %s314 = scalar_lea.vmem %s1, %s313
      %p315 = pneg %p67
      %p316 = pneg %p64
      %p317 = pneg %p88
      %p318 = pneg %p85
      %p319 = pneg %p109
      %p320 = pneg %p106
      %p321 = pneg %p130
      %p322 = pneg %p127
      %p323 = pneg %p151
      %p324 = pneg %p148
      %p325 = pneg %p172
      %p326 = pneg %p169
      %p327 = pneg %p193
      %p328 = pneg %p190
      %p329 = pneg %p214
      %p330 = pneg %p211
      %p331 = pneg %p240
      %p332 = pneg %p237
      %p333 = scmp.lt.s32.totalorder %s20, 1
      %s334 = scalar_select %p333, %s20, 1
      %s335 = smul.addr %s334, 2
      %s336 = smul.addr %s335, 8
      %s337 = scalar_lea.vmem %s9, %s336
      %p338 = scmp.lt.s32.totalorder %s20, 1
      %s339 = scalar_select %p338, %s20, 1
      %s340 = smul.addr %s339, 2
      %s341 = smul.addr %s340, 8
      %s342 = scalar_lea.vmem %s0, %s341
      %p343 = scmp.lt.s32.totalorder %s20, 1
      %s344 = scalar_select %p343, %s20, 1
      %s345 = smul.addr %s344, 2
      %s346 = smul.addr %s345, 8
      %s347 = scalar_lea.vmem %s1, %s346
      %p348 = scmp.lt.s32.totalorder %s20, 1
      %s349 = scalar_select %p348, %s20, 1
      %s350 = smul.addr %s349, 2
      %s351 = smul.addr %s350, 8
      %s352 = scalar_lea.vmem %s9, %s351
      %v353 = vld [vmem:[%s342] sm:$0xff]
      %v354 = vld [vmem:[%s342 + $0x8] sm:$0xff]
      %v355 = vld [vmem:[%s347] sm:$0xff]
      %v356 = vld [vmem:[%s347 + $0x8] sm:$0xff]
      %v357 = vadd.f32 %v353, %v355
      %v358 = vadd.f32 %v354, %v356
      %359 = vadd.xlane.f32.xlu0 %v357
      %v360 = vpop.xlane.xlu0 %359
      %361 = vadd.xlane.f32.xlu0 %v358
      %v362 = vpop.xlane.xlu0 %361
      %v363 = vmul.f32 %v360, 0.015625
      %v364 = vmul.f32 %v362, 0.015625
      %v365 = vld [vmem:[%s5] sm:$0xf]
      %v366 = vld [vmem:[%s6] sm:$0xf]
      %368 = vset.pattern.permute.xlu0 0
      %369 = vperm.xlu0 %368, %v366
      %v370 = vpop.permute.xlu0 %369
      %vm372 = vcmask 130048
      %v374 = vsel %vm372, %v365, 0
      %376 = vmatprep.subr.mxu0 0.0
      %377 = vmatpush1.msra.mxu0 0.0
      %378 = vmatprep.subr.mxu0 0.0
      %379 = vmatpush1.msra.mxu0 0.0
      %380 = vmatprep.subr.mxu0 0.0
      %381 = vmatpush1.msra.mxu0 0.0
      %382 = vmatprep.subr.mxu0 0.0
      %383 = vmatpush1.msra.mxu0 0.0
      %384 = vmatprep.subr.mxu0 0.0
      %385 = vmatpush1.msra.mxu0 0.0
      %386 = vmatprep.subr.mxu0 0.0
      %387 = vmatpush1.msra.mxu0 0.0
      %388 = vmatprep.subr.mxu0 0.0
      %389 = vmatpush1.msra.mxu0 0.0
      %390 = vmatprep.subr.mxu0 0.0
      %391 = vmatpush1.msra.mxu0 0.0
      %392 = vmatprep.subr.mxu0 0.0
      %393 = vmatpush1.msra.mxu0 0.0
      %394 = vmatprep.subr.mxu0 0.0
      %395 = vmatpush1.msra.mxu0 0.0
      %396 = vmatprep.subr.mxu0 0.0
      %397 = vmatpush1.msra.mxu0 0.0
      %398 = vmatprep.subr.mxu0 0.0
      %399 = vmatpush1.msra.mxu0 0.0
      %400 = vmatprep.subr.mxu0 0.0
      %401 = vmatpush1.msra.mxu0 0.0
      %402 = vmatprep.subr.mxu0 0.0
      %403 = vmatpush1.msra.mxu0 0.0
      %404 = vmatprep.subr.mxu0 0.0
      %405 = vmatpush1.msra.mxu0 %v364
      %406 = vmatprep.subr.mxu0 0.0
      %407 = vmatpush1.msra.mxu0 %v363
      %408 = vmatprep.subr.mxu0 0.0
      %409 = vmatpush2.msra.mxu0 0.0
      %410 = vmatprep.subr.mxu0 0.0
      %411 = vmatpush2.msra.mxu0 0.0
      %412 = vmatprep.subr.mxu0 0.0
      %413 = vmatpush2.msra.mxu0 0.0
      %414 = vmatprep.subr.mxu0 0.0
      %415 = vmatpush2.msra.mxu0 0.0
      %416 = vmatprep.subr.mxu0 0.0
      %417 = vmatpush2.msra.mxu0 0.0
      %418 = vmatprep.subr.mxu0 0.0
      %419 = vmatpush2.msra.mxu0 0.0
      %420 = vmatprep.subr.mxu0 0.0
      %421 = vmatpush2.msra.mxu0 0.0
      %422 = vmatprep.subr.mxu0 0.0
      %423 = vmatpush2.msra.mxu0 0.0
      %424 = vmatprep.subr.mxu0 0.0
      %425 = vmatpush2.msra.mxu0 0.0
      %426 = vmatprep.subr.mxu0 0.0
      %427 = vmatpush2.msra.mxu0 0.0
      %428 = vmatprep.subr.mxu0 0.0
      %429 = vmatpush2.msra.mxu0 0.0
      %430 = vmatprep.subr.mxu0 0.0
      %431 = vmatpush2.msra.mxu0 0.0
      %432 = vmatprep.subr.mxu0 0.0
      %433 = vmatpush2.msra.mxu0 0.0
      %434 = vmatprep.subr.mxu0 0.0
      %435 = vmatpush2.msra.mxu0 0.0
      %436 = vmatprep.subr.mxu0 0.0
      %437 = vmatpush2.msra.mxu0 0.0
      %438 = vmatprep.subr.mxu0 0.0
      %439 = vmatpush2.msra.mxu0 0.0
      %440 = vmatprep.mubr.f32.mxu0 0.0
      %441 = vmatmul.mubr.f32.gmra.mxu0 %v374
      %v442 = vpop.f32.mrf.mxu0
      %v443 = vadd.f32 %v370, %v442
      %v444 = vpop.f32.mrf.mxu0
      %445 = vdwg.mxu0
      %v446 = vmax.f32 %v443, 0.0
      %v447 = vld [vmem:[%s7] sm:$0xff]
      %v448 = vld [vmem:[%s7 + $0x8] sm:$0xff]
      %vm449 = vcmask 31744
      %v451 = vsel %vm449, %v447, 0
      %v454 = vsel %vm449, %v448, 0
      %vm456 = vcmask 1043456
      %v458 = vsel %vm456, %v446, 0
      %460 = vmatprep.subr.mxu0 0.0
      %461 = vmatpush1.msra.mxu0 0.0
      %462 = vmatprep.subr.mxu0 0.0
      %463 = vmatpush1.msra.mxu0 0.0
      %464 = vmatprep.subr.mxu0 0.0
      %465 = vmatpush1.msra.mxu0 0.0
      %466 = vmatprep.subr.mxu0 0.0
      %467 = vmatpush1.msra.mxu0 0.0
      %468 = vmatprep.subr.mxu0 0.0
      %469 = vmatpush1.msra.mxu0 0.0
      %470 = vmatprep.subr.mxu0 0.0
      %471 = vmatpush1.msra.mxu0 0.0
      %472 = vmatprep.subr.mxu0 0.0
      %473 = vmatpush1.msra.mxu0 0.0
      %474 = vmatprep.subr.mxu0 0.0
      %475 = vmatpush1.msra.mxu0 0.0
      %476 = vmatprep.subr.mxu0 0.0
      %477 = vmatpush1.msra.mxu0 0.0
      %478 = vmatprep.subr.mxu0 0.0
      %479 = vmatpush1.msra.mxu0 0.0
      %480 = vmatprep.subr.mxu0 0.0
      %481 = vmatpush1.msra.mxu0 0.0
      %482 = vmatprep.subr.mxu0 0.0
      %483 = vmatpush1.msra.mxu0 0.0
      %484 = vmatprep.subr.mxu0 0.0
      %485 = vmatpush1.msra.mxu0 0.0
      %486 = vmatprep.subr.mxu0 0.0
      %487 = vmatpush1.msra.mxu0 0.0
      %488 = vmatprep.subr.mxu0 0.0
      %489 = vmatpush1.msra.mxu0 0.0
      %490 = vmatprep.subr.mxu0 0.0
      %491 = vmatpush1.msra.mxu0 %v458
      %492 = vmatprep.subr.mxu0 0.0
      %493 = vmatpush2.msra.mxu0 0.0
      %494 = vmatprep.subr.mxu0 0.0
      %495 = vmatpush2.msra.mxu0 0.0
      %496 = vmatprep.subr.mxu0 0.0
      %497 = vmatpush2.msra.mxu0 0.0
      %498 = vmatprep.subr.mxu0 0.0
      %499 = vmatpush2.msra.mxu0 0.0
      %500 = vmatprep.subr.mxu0 0.0
      %501 = vmatpush2.msra.mxu0 0.0
      %502 = vmatprep.subr.mxu0 0.0
      %503 = vmatpush2.msra.mxu0 0.0
      %504 = vmatprep.subr.mxu0 0.0
      %505 = vmatpush2.msra.mxu0 0.0
      %506 = vmatprep.subr.mxu0 0.0
      %507 = vmatpush2.msra.mxu0 0.0
      %508 = vmatprep.subr.mxu0 0.0
      %509 = vmatpush2.msra.mxu0 0.0
      %510 = vmatprep.subr.mxu0 0.0
      %511 = vmatpush2.msra.mxu0 0.0
      %512 = vmatprep.subr.mxu0 0.0
      %513 = vmatpush2.msra.mxu0 0.0
      %514 = vmatprep.subr.mxu0 0.0
      %515 = vmatpush2.msra.mxu0 0.0
      %516 = vmatprep.subr.mxu0 0.0
      %517 = vmatpush2.msra.mxu0 0.0
      %518 = vmatprep.subr.mxu0 0.0
      %519 = vmatpush2.msra.mxu0 0.0
      %520 = vmatprep.subr.mxu0 0.0
      %521 = vmatpush2.msra.mxu0 0.0
      %522 = vmatprep.subr.mxu0 0.0
      %523 = vmatpush2.msra.mxu0 0.0
      %524 = vmatprep.mubr.f32.mxu0 0.0
      %525 = vmatmul.mubr.f32.gmra.mxu0 %v451
      %v526 = vpop.f32.mrf.mxu0
      %v527 = vadd.f32 0.0, %v526
      %v528 = vpop.f32.mrf.mxu0
      %529 = vmatprep.mubr.f32.mxu0 0.0
      %530 = vmatmul.mubr.f32.gmra.mxu0 %v454
      %v531 = vpop.f32.mrf.mxu0
      %v532 = vadd.f32 0.0, %v531
      %v533 = vpop.f32.mrf.mxu0
      %534 = vdwg.mxu0
      %v535 = vld [vmem:[%s2] sm:$0xf]
      %v536 = vld [vmem:[%s3] sm:$0xf]
      %538 = vset.pattern.permute.xlu0 0
      %539 = vperm.xlu0 %538, %v536
      %v540 = vpop.permute.xlu0 %539
      %v543 = vsel %vm372, %v535, 0
      %545 = vmatprep.subr.mxu0 0.0
      %546 = vmatpush1.msra.mxu0 0.0
      %547 = vmatprep.subr.mxu0 0.0
      %548 = vmatpush1.msra.mxu0 0.0
      %549 = vmatprep.subr.mxu0 0.0
      %550 = vmatpush1.msra.mxu0 0.0
      %551 = vmatprep.subr.mxu0 0.0
      %552 = vmatpush1.msra.mxu0 0.0
      %553 = vmatprep.subr.mxu0 0.0
      %554 = vmatpush1.msra.mxu0 0.0
      %555 = vmatprep.subr.mxu0 0.0
      %556 = vmatpush1.msra.mxu0 0.0
      %557 = vmatprep.subr.mxu0 0.0
      %558 = vmatpush1.msra.mxu0 0.0
      %559 = vmatprep.subr.mxu0 0.0
      %560 = vmatpush1.msra.mxu0 0.0
      %561 = vmatprep.subr.mxu0 0.0
      %562 = vmatpush1.msra.mxu0 0.0
      %563 = vmatprep.subr.mxu0 0.0
      %564 = vmatpush1.msra.mxu0 0.0
      %565 = vmatprep.subr.mxu0 0.0
      %566 = vmatpush1.msra.mxu0 0.0
      %567 = vmatprep.subr.mxu0 0.0
      %568 = vmatpush1.msra.mxu0 0.0
      %569 = vmatprep.subr.mxu0 0.0
      %570 = vmatpush1.msra.mxu0 0.0
      %571 = vmatprep.subr.mxu0 0.0
      %572 = vmatpush1.msra.mxu0 0.0
      %573 = vmatprep.subr.mxu0 0.0
      %574 = vmatpush1.msra.mxu0 %v358
      %575 = vmatprep.subr.mxu0 0.0
      %576 = vmatpush1.msra.mxu0 %v357
      %577 = vmatprep.subr.mxu0 0.0
      %578 = vmatpush2.msra.mxu0 0.0
      %579 = vmatprep.subr.mxu0 0.0
      %580 = vmatpush2.msra.mxu0 0.0
      %581 = vmatprep.subr.mxu0 0.0
      %582 = vmatpush2.msra.mxu0 0.0
      %583 = vmatprep.subr.mxu0 0.0
      %584 = vmatpush2.msra.mxu0 0.0
      %585 = vmatprep.subr.mxu0 0.0
      %586 = vmatpush2.msra.mxu0 0.0
      %587 = vmatprep.subr.mxu0 0.0
      %588 = vmatpush2.msra.mxu0 0.0
      %589 = vmatprep.subr.mxu0 0.0
      %590 = vmatpush2.msra.mxu0 0.0
      %591 = vmatprep.subr.mxu0 0.0
      %592 = vmatpush2.msra.mxu0 0.0
      %593 = vmatprep.subr.mxu0 0.0
      %594 = vmatpush2.msra.mxu0 0.0
      %595 = vmatprep.subr.mxu0 0.0
      %596 = vmatpush2.msra.mxu0 0.0
      %597 = vmatprep.subr.mxu0 0.0
      %598 = vmatpush2.msra.mxu0 0.0
      %599 = vmatprep.subr.mxu0 0.0
      %600 = vmatpush2.msra.mxu0 0.0
      %601 = vmatprep.subr.mxu0 0.0
      %602 = vmatpush2.msra.mxu0 0.0
      %603 = vmatprep.subr.mxu0 0.0
      %604 = vmatpush2.msra.mxu0 0.0
      %605 = vmatprep.subr.mxu0 0.0
      %606 = vmatpush2.msra.mxu0 0.0
      %607 = vmatprep.subr.mxu0 0.0
      %608 = vmatpush2.msra.mxu0 0.0
      %609 = vmatprep.mubr.f32.mxu0 0.0
      %610 = vmatmul.mubr.f32.gmra.mxu0 %v543
      %v611 = vpop.f32.mrf.mxu0
      %v612 = vadd.f32 %v540, %v611
      %v613 = vpop.f32.mrf.mxu0
      %614 = vdwg.mxu0
      %v615 = vmax.f32 %v612, 0.0
      %v616 = vld [vmem:[%s4] sm:$0xff]
      %v617 = vld [vmem:[%s4 + $0x8] sm:$0xff]
      %619 = vset.pattern.permute.xlu0 0
      %620 = vperm.xlu0 %619, %v527
      %v621 = vpop.permute.xlu0 %620
      %624 = vset.pattern.permute.xlu0 0
      %625 = vperm.xlu0 %624, %v532
      %v626 = vpop.permute.xlu0 %625
      %v629 = vsel %vm449, %v616, 0
      %v632 = vsel %vm449, %v617, 0
      %v635 = vsel %vm456, %v615, 0
      %637 = vmatprep.subr.mxu0 0.0
      %638 = vmatpush1.msra.mxu0 0.0
      %639 = vmatprep.subr.mxu0 0.0
      %640 = vmatpush1.msra.mxu0 0.0
      %641 = vmatprep.subr.mxu0 0.0
      %642 = vmatpush1.msra.mxu0 0.0
      %643 = vmatprep.subr.mxu0 0.0
      %644 = vmatpush1.msra.mxu0 0.0
      %645 = vmatprep.subr.mxu0 0.0
      %646 = vmatpush1.msra.mxu0 0.0
      %647 = vmatprep.subr.mxu0 0.0
      %648 = vmatpush1.msra.mxu0 0.0
      %649 = vmatprep.subr.mxu0 0.0
      %650 = vmatpush1.msra.mxu0 0.0
      %651 = vmatprep.subr.mxu0 0.0
      %652 = vmatpush1.msra.mxu0 0.0
      %653 = vmatprep.subr.mxu0 0.0
      %654 = vmatpush1.msra.mxu0 0.0
      %655 = vmatprep.subr.mxu0 0.0
      %656 = vmatpush1.msra.mxu0 0.0
      %657 = vmatprep.subr.mxu0 0.0
      %658 = vmatpush1.msra.mxu0 0.0
      %659 = vmatprep.subr.mxu0 0.0
      %660 = vmatpush1.msra.mxu0 0.0
      %661 = vmatprep.subr.mxu0 0.0
      %662 = vmatpush1.msra.mxu0 0.0
      %663 = vmatprep.subr.mxu0 0.0
      %664 = vmatpush1.msra.mxu0 0.0
      %665 = vmatprep.subr.mxu0 0.0
      %666 = vmatpush1.msra.mxu0 0.0
      %667 = vmatprep.subr.mxu0 0.0
      %668 = vmatpush1.msra.mxu0 %v635
      %669 = vmatprep.subr.mxu0 0.0
      %670 = vmatpush2.msra.mxu0 0.0
      %671 = vmatprep.subr.mxu0 0.0
      %672 = vmatpush2.msra.mxu0 0.0
      %673 = vmatprep.subr.mxu0 0.0
      %674 = vmatpush2.msra.mxu0 0.0
      %675 = vmatprep.subr.mxu0 0.0
      %676 = vmatpush2.msra.mxu0 0.0
      %677 = vmatprep.subr.mxu0 0.0
      %678 = vmatpush2.msra.mxu0 0.0
      %679 = vmatprep.subr.mxu0 0.0
      %680 = vmatpush2.msra.mxu0 0.0
      %681 = vmatprep.subr.mxu0 0.0
      %682 = vmatpush2.msra.mxu0 0.0
      %683 = vmatprep.subr.mxu0 0.0
      %684 = vmatpush2.msra.mxu0 0.0
      %685 = vmatprep.subr.mxu0 0.0
      %686 = vmatpush2.msra.mxu0 0.0
      %687 = vmatprep.subr.mxu0 0.0
      %688 = vmatpush2.msra.mxu0 0.0
      %689 = vmatprep.subr.mxu0 0.0
      %690 = vmatpush2.msra.mxu0 0.0
      %691 = vmatprep.subr.mxu0 0.0
      %692 = vmatpush2.msra.mxu0 0.0
      %693 = vmatprep.subr.mxu0 0.0
      %694 = vmatpush2.msra.mxu0 0.0
      %695 = vmatprep.subr.mxu0 0.0
      %696 = vmatpush2.msra.mxu0 0.0
      %697 = vmatprep.subr.mxu0 0.0
      %698 = vmatpush2.msra.mxu0 0.0
      %699 = vmatprep.subr.mxu0 0.0
      %700 = vmatpush2.msra.mxu0 0.0
      %701 = vmatprep.mubr.f32.mxu0 0.0
      %702 = vmatmul.mubr.f32.gmra.mxu0 %v629
      %v703 = vpop.f32.mrf.mxu0
      %v704 = vadd.f32 %v621, %v703
      %v705 = vpop.f32.mrf.mxu0
      %706 = vmatprep.mubr.f32.mxu0 0.0
      %707 = vmatmul.mubr.f32.gmra.mxu0 %v632
      %v708 = vpop.f32.mrf.mxu0
      %v709 = vadd.f32 %v626, %v708
      %v710 = vpop.f32.mrf.mxu0
      %711 = vdwg.mxu0
      %v712 = vld [vmem:[%s8] sm:$0xff]
      %v713 = vld [vmem:[%s8 + $0x8] sm:$0xff]
      %715 = vset.pattern.permute.xlu0 0
      %716 = vperm.xlu0 %715, %v712
      %v717 = vpop.permute.xlu0 %716
      %720 = vset.pattern.permute.xlu0 0
      %721 = vperm.xlu0 %720, %v713
      %v722 = vpop.permute.xlu0 %721
      %v724 = vadd.f32 %v704, %v717
      %v725 = vadd.f32 %v709, %v722
      %v726 = vxor.u32 %v724, 2147483648
      %v727 = vxor.u32 %v725, 2147483648
      %v728 = vmul.f32 %v726, 1.442695
      %v729 = vpow.pop %v728
      %v730 = vmul.f32 %v727, 1.442695
      %v731 = vpow.pop %v730
      %v732 = vadd.f32 %v729, 1.0
      %v733 = vadd.f32 %v731, 1.0
      %v734 = vrcp.pop %v732
      %v735 = vmul.f32 1.0, %v734
      %v736 = vrcp.pop %v733
      %v737 = vmul.f32 1.0, %v736
      %v738 = vmul.f32 %v353, 2.0
      %v739 = vmul.f32 %v354, 2.0
      %v740 = vmul.f32 %v738, %v735
      %v741 = vmul.f32 %v739, %v737
      %v742 = vmul.f32 %v355, 2.0
      %v743 = vmul.f32 %v356, 2.0
      %v744 = vsub.f32 1.0, %v735
      %v745 = vsub.f32 1.0, %v737
      %v746 = vmul.f32 %v742, %v744
      %v747 = vmul.f32 %v743, %v745
      %v748 = vadd.f32 %v740, %v746
      %v749 = vadd.f32 %v741, %v747
      %750 = vst [vmem:[%s352] sm:$0xff] %v748
      %751 = vst [vmem:[%s352 + $0x8] sm:$0xff] %v749
      %p752 = scmp.lt.s32.totalorder %s20, 1
      %s753 = scalar_select %p752, %s20, 1
      %s754 = smul.addr %s753, 2
      %s755 = smul.addr %s754, 8
      %s756 = scalar_lea.vmem %s9, %s755
      // Predicated region
      $region57: #{aff_forward.1} parent=55 // pred_check
        %p757 = pneg %p237
      $region58: #{aff_forward.1} parent=55 // pred_check_branch
        %759 = sbr.rel (%p757) target = $region60
      $region59: #{aff_forward.1} parent=55 // pred_region
        _
      $region60: #{aff_forward.1} parent=55 // pred_fallthru
        _
    $region56: #{aff_forward.1} parent=5 // pred_fallthru
      _
    %p760 = scmp.le.s32.totalorder 2, %s15
    // Predicated region
    $region61: #{aff_forward.1} parent=5 // pred_check
      %p761 = pneg %p760
    $region62: #{aff_forward.1} parent=5 // pred_check_branch
      %763 = sbr.rel (%p761) target = $region64
    $region63: #{aff_forward.1} parent=5 // pred_region
      %s764 = ssub.s32 %s15, 2
      // Predicated region
      $region65: #{aff_forward.1} parent=63 // pred_check
        %p765 = pneg %p243
      $region66: #{aff_forward.1} parent=63 // pred_check_branch
        %767 = sbr.rel (%p765) target = $region68
      $region67: #{aff_forward.1} parent=63 // pred_region
        %p768 = scmp.lt.s32.totalorder %s21, 1
        %s769 = scalar_select %p768, %s21, 1
        %s770 = smul.addr %s769, 2
        %s771 = smul.addr %s770, 8
        %s772 = scalar_lea.vmem %s9, %s771
      $region68: #{aff_forward.1} parent=63 // pred_fallthru
        _
    $region64: #{aff_forward.1} parent=5 // pred_fallthru
      _
  $region6: #{aff_forward.1} parent=0 // loop_footer
    %s19 = sadd.s32 1, %s15
  $region7: #{aff_forward.1} parent=0 // loop_footer_branch
    %14 = sbr.rel target = $region3
  $region8: #{aff_forward.1} parent=0 // loop_exit
    _

</llo_original>
